<compile_context>
chip_gen: v5e
topology: v5e:2x2
jax: 0.10.0
libtpu: 0.0.40
codegen_flags: <defaults>
</compile_context>

<pallas_src>
import functools
import math

import jax
import jax.numpy as jnp
from jax.experimental import pallas as pl
from jax.experimental.pallas import tpu as pltpu

# ---------------- small shapes consistent with DETR's MLP heads -------------
BATCH = 2
NUM_QUERIES = 8
INPUT_DIM = 64      # transformer hidden dim (scaled down)
HIDDEN_DIM = 32
OUTPUT_DIM = 4      # e.g. bbox head (4 coords)
NUM_LAYERS = 3
DROPOUT = 0.0       # reference default / eval -> identity

LANE = 128          # vreg lane width
BF16_SUBLANE = 16   # bf16 sublane-tile height (rows per vreg / tile boundary)


def _round_up(x, m):
    return (x + m - 1) // m * m


# ------------------------------ Pallas kernel -------------------------------
def _mlp_fused_kernel(x_ref, wb_ref, o_ref, *, w_offs, b_offs):
    """Fully fused MLP.

    x_ref : (n_pad, d_pad) bf16    — lane/sublane padded activations
    wb_ref: (rows, d_pad)  bf16    — packed [W0 | b0 | W1 | b1 | ...] slab
    o_ref : (n_pad, d_pad) f32     — lane-dense padded output slab
    """
    num_layers = len(w_offs)
    d_pad = x_ref.shape[-1]

    h = x_ref[...]                                   # bf16 MXU input
    for i in range(num_layers):
        # Static slices into the packed slab (16-row aligned -> zero cost).
        w = wb_ref[w_offs[i]:w_offs[i] + d_pad, :]                 # (d_pad, d_pad) bf16
        b = wb_ref[b_offs[i]:b_offs[i] + 1, :].astype(jnp.float32)  # (1, d_pad) f32
        acc = jnp.dot(h, w, preferred_element_type=jnp.float32) + b  # f32 accumulate
        if i < num_layers - 1:
            h = jnp.maximum(acc, 0.0).astype(x_ref.dtype)  # ReLU in f32, bf16 for next MXU
        else:
            h = acc                                        # last layer: no ReLU
        # TODO(synk): nn.Dropout(p=DROPOUT) is identity at p=0 / inference -> not emitted.
    o_ref[...] = h.astype(o_ref.dtype)


# --------------------- one-time parameter preparation -----------------------
def prepare_mlp_params(weights, biases, dtype=jnp.bfloat16):
    """Pack all layer weights/biases into one lane-dense, zero-padded slab.

    Runs ONCE (not per forward). Returns (slab, w_offs, b_offs, d_pad).
    Layout: for each layer i, d_pad rows of W_i (zero-padded) followed by a
    16-row bias block (bias in row 0, rest zero). All offsets are multiples of
    16 so bf16 tile boundaries are never straddled.
    """
    dims = [w.shape[0] for w in weights] + [weights[-1].shape[1]]
    d_pad = max(_round_up(d, LANE) for d in dims)

    segs, w_offs, b_offs = [], [], []
    row = 0
    for w, b in zip(weights, biases):
        d_in, d_out = w.shape
        w_pad = jnp.zeros((d_pad, d_pad), dtype).at[:d_in, :d_out].set(w.astype(dtype))
        b_pad = jnp.zeros((BF16_SUBLANE, d_pad), dtype).at[0, :d_out].set(b.astype(dtype))
        w_offs.append(row); row += d_pad
        b_offs.append(row); row += BF16_SUBLANE
        segs += [w_pad, b_pad]

    slab = jnp.concatenate(segs, axis=0)
    return slab, tuple(w_offs), tuple(b_offs), d_pad


# ------------------------------ Python wrapper -------------------------------
@functools.partial(jax.jit, static_argnames=("w_offs", "b_offs", "out_dim", "d_pad"))
def mlp_forward(x, wb_slab, *, w_offs, b_offs, out_dim, d_pad):
    """Pallas equivalent of torch MLP.forward (eval / dropout=0)."""
    *lead, d_in = x.shape
    n_rows = math.prod(lead) if lead else 1

    # Flatten leading dims to rows; pad rows to bf16 sublane tile, lanes to 128.
    n_pad = _round_up(max(n_rows, BF16_SUBLANE), BF16_SUBLANE)
    x2 = x.reshape(n_rows, d_in).astype(jnp.bfloat16)
    x2 = jnp.pad(x2, ((0, n_pad - n_rows), (0, d_pad - d_in)))

    kernel = functools.partial(_mlp_fused_kernel, w_offs=w_offs, b_offs=b_offs)

    # Grid-less call: whole arrays resident in VMEM, no double-buffering.
    out = pl.pallas_call(
        kernel,
        out_shape=jax.ShapeDtypeStruct((n_pad, d_pad), jnp.float32),
        in_specs=[
            pl.BlockSpec(memory_space=pltpu.MemorySpace.VMEM),  # x slab
            pl.BlockSpec(memory_space=pltpu.MemorySpace.VMEM),  # packed W/b slab
        ],
        out_specs=pl.BlockSpec(memory_space=pltpu.MemorySpace.VMEM),
    )(x2, wb_slab)

    out = out[:n_rows, :out_dim]
    return out.reshape(*lead, out_dim)


# ------------------------------------ main -----------------------------------
if __name__ == "__main__":
    key = jax.random.PRNGKey(0)
    k_x, *k_w = jax.random.split(key, 1 + 2 * NUM_LAYERS)

    dims = [INPUT_DIM] + [HIDDEN_DIM] * (NUM_LAYERS - 1) + [OUTPUT_DIM]
    weights, biases = [], []
    for i in range(NUM_LAYERS):
        weights.append(
            jax.random.normal(k_w[2 * i], (dims[i], dims[i + 1]), jnp.float32) * 0.02
        )
        biases.append(
            jax.random.normal(k_w[2 * i + 1], (dims[i + 1],), jnp.float32) * 0.02
        )

    x = jax.random.normal(k_x, (BATCH, NUM_QUERIES, INPUT_DIM), jnp.float32)

    # One-time parameter packing (hoisted out of the forward hot path).
    wb_slab, w_offs, b_offs, d_pad = prepare_mlp_params(weights, biases)

    out = mlp_forward(
        x, wb_slab, w_offs=w_offs, b_offs=b_offs, out_dim=OUTPUT_DIM, d_pad=d_pad
    )
    out = jax.block_until_ready(out)

    # Pure-JAX reference with the SAME bf16 MXU-input rounding as the kernel
    # (f32 accumulate / bias / ReLU, bf16 re-cast between layers).
    def bf16_round(v):
        return v.astype(jnp.bfloat16).astype(jnp.float32)

    h = bf16_round(x.reshape(-1, INPUT_DIM))
    for i in range(NUM_LAYERS):
        h = h @ bf16_round(weights[i]) + bf16_round(biases[i])
        if i < NUM_LAYERS - 1:
            h = bf16_round(jnp.maximum(h, 0.0))
    ref = h.reshape(BATCH, NUM_QUERIES, OUTPUT_DIM)

    assert out.shape == (BATCH, NUM_QUERIES, OUTPUT_DIM)
    assert bool(jnp.all(jnp.isfinite(out)))
    assert bool(jnp.allclose(out, ref, atol=1e-4, rtol=1e-3)), (
        float(jnp.max(jnp.abs(out - ref)))
    )

    print("KERNEL_OK")
</pallas_src>

<mosaic_0001>
module attributes {stable_mosaic.version = 11 : i64} {
  func.func @_mlp_fused_kernel(%arg0: memref<16x128xbf16, #tpu.memory_space<vmem>>, %arg1: memref<432x128xbf16, #tpu.memory_space<vmem>>, %arg2: memref<16x128xf32, #tpu.memory_space<vmem>>) attributes {dimension_semantics = [], scalar_prefetch = 0 : i64, scratch_operands = 0 : i64, tpu.core_type = #tpu.core_type<tc>} {
    %c0 = arith.constant 0 : index
    %c0_0 = arith.constant 0 : index
    %0 = vector.load %arg0[%c0, %c0_0] : memref<16x128xbf16, #tpu.memory_space<vmem>>, vector<16x128xbf16>
    %c0_1 = arith.constant 0 : index
    %c0_2 = arith.constant 0 : index
    %1 = vector.load %arg1[%c0_1, %c0_2] : memref<432x128xbf16, #tpu.memory_space<vmem>>, vector<128x128xbf16>
    %c128 = arith.constant 128 : index
    %c0_3 = arith.constant 0 : index
    %2 = vector.load %arg1[%c128, %c0_3] : memref<432x128xbf16, #tpu.memory_space<vmem>>, vector<1x128xbf16>
    %3 = arith.extf %2 : vector<1x128xbf16> to vector<1x128xf32>
    %cst = arith.constant dense<0.000000e+00> : vector<16x128xf32>
    %4 = tpu.matmul %0, %1, %cst {dimension_numbers = #tpu.dot_dimension_numbers<[1], [0], [0], [1], [0, 0, 1, 1], [], []>} : vector<16x128xbf16>, vector<128x128xbf16>, vector<16x128xf32> -> vector<16x128xf32>
    %5 = vector.broadcast %3 : vector<1x128xf32> to vector<16x128xf32>
    %6 = arith.addf %4, %5 : vector<16x128xf32>
    %cst_4 = arith.constant 0.000000e+00 : f32
    %7 = vector.broadcast %cst_4 : f32 to vector<16x128xf32>
    %8 = arith.maximumf %6, %7 : vector<16x128xf32>
    %9 = arith.truncf %8 : vector<16x128xf32> to vector<16x128xbf16>
    %c144 = arith.constant 144 : index
    %c0_5 = arith.constant 0 : index
    %10 = vector.load %arg1[%c144, %c0_5] : memref<432x128xbf16, #tpu.memory_space<vmem>>, vector<128x128xbf16>
    %c272 = arith.constant 272 : index
    %c0_6 = arith.constant 0 : index
    %11 = vector.load %arg1[%c272, %c0_6] : memref<432x128xbf16, #tpu.memory_space<vmem>>, vector<1x128xbf16>
    %12 = arith.extf %11 : vector<1x128xbf16> to vector<1x128xf32>
    %cst_7 = arith.constant dense<0.000000e+00> : vector<16x128xf32>
    %13 = tpu.matmul %9, %10, %cst_7 {dimension_numbers = #tpu.dot_dimension_numbers<[1], [0], [0], [1], [0, 0, 1, 1], [], []>} : vector<16x128xbf16>, vector<128x128xbf16>, vector<16x128xf32> -> vector<16x128xf32>
    %14 = vector.broadcast %12 : vector<1x128xf32> to vector<16x128xf32>
    %15 = arith.addf %13, %14 : vector<16x128xf32>
    %cst_8 = arith.constant 0.000000e+00 : f32
    %16 = vector.broadcast %cst_8 : f32 to vector<16x128xf32>
    %17 = arith.maximumf %15, %16 : vector<16x128xf32>
    %18 = arith.truncf %17 : vector<16x128xf32> to vector<16x128xbf16>
    %c288 = arith.constant 288 : index
    %c0_9 = arith.constant 0 : index
    %19 = vector.load %arg1[%c288, %c0_9] : memref<432x128xbf16, #tpu.memory_space<vmem>>, vector<128x128xbf16>
    %c416 = arith.constant 416 : index
    %c0_10 = arith.constant 0 : index
    %20 = vector.load %arg1[%c416, %c0_10] : memref<432x128xbf16, #tpu.memory_space<vmem>>, vector<1x128xbf16>
    %21 = arith.extf %20 : vector<1x128xbf16> to vector<1x128xf32>
    %cst_11 = arith.constant dense<0.000000e+00> : vector<16x128xf32>
    %22 = tpu.matmul %18, %19, %cst_11 {dimension_numbers = #tpu.dot_dimension_numbers<[1], [0], [0], [1], [0, 0, 1, 1], [], []>} : vector<16x128xbf16>, vector<128x128xbf16>, vector<16x128xf32> -> vector<16x128xf32>
    %23 = vector.broadcast %21 : vector<1x128xf32> to vector<16x128xf32>
    %24 = arith.addf %22, %23 : vector<16x128xf32>
    %c0_12 = arith.constant 0 : index
    %c0_13 = arith.constant 0 : index
    %25 = vector.load %arg2[%c0_12, %c0_13] : memref<16x128xf32, #tpu.memory_space<vmem>>, vector<16x128xf32>
    tpu.vector_store %arg2[%c0_12, %c0_13], %24 {strides = array<i32>} : memref<16x128xf32, #tpu.memory_space<vmem>>, vector<16x128xf32>,
    return
  }
}

</mosaic_0001>

<llo_original>
// kernel: mlp_forward.1
$region0: #{mlp_forward.1}
  #allocation0 [shape = 'u32[]', space=smem, size = 0x4, offset = 0x4, fixed_abs, tag = 'smem constant byte address 0x4 - core index']
  #allocation1 [shape = 'u32[72,128]{1,0:T(1,128)}', space=vmem, size = 0x9000, scoped, tag = 'internal scratch']
  %s0 = inlined_call_operand.vmem [shape: bf16[16,128], index: 0, kind: input, shape index: {}]
  %s1 = inlined_call_operand.hbm [shape: bf16[432,128], index: 1, kind: input, shape index: {}]
  %s2 = inlined_call_operand.vmem [shape: f32[16,128], index: 2, kind: output, shape index: {}]
  %s3 = sld [smem:[#allocation0]]
  $region22: #{mlp_forward.1} parent=0
    _
  %s5 = ssub.s32 1, %s3
  %s6 = scalar_select 0, %s5, %s3
  $region1: #{mlp_forward.1} parent=0
    #allocation2 [shape = 'u8[110592]{0}', space=vmem, size = 0x1b000, scoped, tag = 'input window, operand 1, single buffered']
    #allocation3 [shape = 's32[1]{0}', space=sflag, size = 0x4, scoped, tag = 'scoped memory for mlp_forward.1']
    %7 = vsyncpa [#allocation3], 0
    // Predicated region
    $region2: #{mlp_forward.1} parent=1 // pred_check
      _
    $region3: #{mlp_forward.1} parent=1 // pred_check_branch
      %9 = sbr.rel (0) target = $region5
    $region4: #{mlp_forward.1} parent=1 // pred_region
      _
    $region5: #{mlp_forward.1} parent=1 // pred_fallthru
      _
    // Predicated region
    $region6: #{mlp_forward.1} parent=1 // pred_check
      _
    $region7: #{mlp_forward.1} parent=1 // pred_check_branch
      %11 = sbr.rel (0) target = $region9
    $region8: #{mlp_forward.1} parent=1 // pred_region
      %13 = vsyncadd [#allocation3], 0
      %s14 = sshll.u32 %s1, 4
      %s15 = int_to_ptr.hbm [resolvable:$true] %s14
      %s16 = sshll.u32 [#allocation2], 4
      %s17 = int_to_ptr.vmem [resolvable:$true] %s16
      %22 = dma.hbm_to_vmem [thread:$0]  %s15, 3456, %s17, [#allocation3], 64, 64, 4
    $region9: #{mlp_forward.1} parent=1 // pred_fallthru
      _
    // Predicated region
    $region10: #{mlp_forward.1} parent=1 // pred_check
      _
    $region11: #{mlp_forward.1} parent=1 // pred_check_branch
      %24 = sbr.rel (0) target = $region13
    $region12: #{mlp_forward.1} parent=1 // pred_region
      %26 = dma.done [#allocation3], 3456
    $region13: #{mlp_forward.1} parent=1 // pred_fallthru
      _
    %v27 = vld [vmem:[%s0] sm:$0xf]
    %v28 = vld [vmem:[%s0 + $0x4] sm:$0xf]
    %v29 = vld [vmem:[#allocation2] sm:$0xf]
    %v30 = vld [vmem:[#allocation2 + $0x4] sm:$0xf]
    %v31 = vld [vmem:[#allocation2 + $0x8] sm:$0xf]
    %v32 = vld [vmem:[#allocation2 + $0xc] sm:$0xf]
    %v33 = vld [vmem:[#allocation2 + $0x10] sm:$0xf]
    %v34 = vld [vmem:[#allocation2 + $0x14] sm:$0xf]
    %v35 = vld [vmem:[#allocation2 + $0x18] sm:$0xf]
    %v36 = vld [vmem:[#allocation2 + $0x1c] sm:$0xf]
    %v37 = vld [vmem:[#allocation2 + $0x20] sm:$0xf]
    %v38 = vld [vmem:[#allocation2 + $0x24] sm:$0xf]
    %v39 = vld [vmem:[#allocation2 + $0x28] sm:$0xf]
    %v40 = vld [vmem:[#allocation2 + $0x2c] sm:$0xf]
    %v41 = vld [vmem:[#allocation2 + $0x30] sm:$0xf]
    %v42 = vld [vmem:[#allocation2 + $0x34] sm:$0xf]
    %v43 = vld [vmem:[#allocation2 + $0x38] sm:$0xf]
    %v44 = vld [vmem:[#allocation2 + $0x3c] sm:$0xf]
    %v45 = vld [vmem:[#allocation2 + $0x40] sm:$0x1]
    %v46 = vunpack.c.l.bf16 %v45
    %v47 = vperm.slane %v46, 0
    %v50 = vunpack.c.l.b16 %v27
    %v51 = vunpack.c.l.b16 %v28
    %v52 = vpack.c.b16 %v51, %v50
    %v70 = vunpack.c.l.b16 %v29
    %v71 = vunpack.c.l.b16 %v30
    %v72 = vunpack.c.l.b16 %v31
    %v73 = vunpack.c.l.b16 %v32
    %v74 = vunpack.c.l.b16 %v33
    %v75 = vunpack.c.l.b16 %v34
    %v76 = vunpack.c.l.b16 %v35
    %v77 = vunpack.c.l.b16 %v36
    %v78 = vunpack.c.l.b16 %v37
    %v79 = vunpack.c.l.b16 %v38
    %v80 = vunpack.c.l.b16 %v39
    %v81 = vunpack.c.l.b16 %v40
    %v82 = vunpack.c.l.b16 %v41
    %v83 = vunpack.c.l.b16 %v42
    %v84 = vunpack.c.l.b16 %v43
    %v85 = vunpack.c.l.b16 %v44
    %v86 = vpack.c.b16 %v71, %v70
    %v87 = vpack.c.b16 %v73, %v72
    %v88 = vpack.c.b16 %v75, %v74
    %v89 = vpack.c.b16 %v77, %v76
    %v90 = vpack.c.b16 %v79, %v78
    %v91 = vpack.c.b16 %v81, %v80
    %v92 = vpack.c.b16 %v83, %v82
    %v93 = vpack.c.b16 %v85, %v84
    %102 = vmatpush.bf16.msra.mxu0 %v93
    %103 = vmatpush.bf16.msra.mxu0 %v92
    %104 = vmatpush.bf16.msra.mxu0 %v91
    %105 = vmatpush.bf16.msra.mxu0 %v90
    %106 = vmatpush.bf16.msra.mxu0 %v89
    %107 = vmatpush.bf16.msra.mxu0 %v88
    %108 = vmatpush.bf16.msra.mxu0 %v87
    %109 = vmatpush.bf16.msra.mxu0 %v86
    %110 = vmatmul.bf16.gmra.mxu0 %v52
    %v111 = vpop.f32.mrf.mxu0
    %v112 = vadd.f32 %v47, %v111
    %v113 = vpop.f32.mrf.mxu0
    %v114 = vadd.f32 %v47, %v113
    %115 = vdwg.mxu0
    %v116 = vmax.f32 %v112, 0.0
    %v117 = vmax.f32 %v114, 0.0
    %v118 = vpack.c.bf16 %v117, %v116
    %v119 = vld [vmem:[#allocation2 + $0x48] sm:$0xf]
    %v120 = vld [vmem:[#allocation2 + $0x4c] sm:$0xf]
    %v121 = vld [vmem:[#allocation2 + $0x50] sm:$0xf]
    %v122 = vld [vmem:[#allocation2 + $0x54] sm:$0xf]
    %v123 = vld [vmem:[#allocation2 + $0x58] sm:$0xf]
    %v124 = vld [vmem:[#allocation2 + $0x5c] sm:$0xf]
    %v125 = vld [vmem:[#allocation2 + $0x60] sm:$0xf]
    %v126 = vld [vmem:[#allocation2 + $0x64] sm:$0xf]
    %v127 = vld [vmem:[#allocation2 + $0x68] sm:$0xf]
    %v128 = vld [vmem:[#allocation2 + $0x6c] sm:$0xf]
    %v129 = vld [vmem:[#allocation2 + $0x70] sm:$0xf]
    %v130 = vld [vmem:[#allocation2 + $0x74] sm:$0xf]
    %v131 = vld [vmem:[#allocation2 + $0x78] sm:$0xf]
    %v132 = vld [vmem:[#allocation2 + $0x7c] sm:$0xf]
    %v133 = vld [vmem:[#allocation2 + $0x80] sm:$0xf]
    %v134 = vld [vmem:[#allocation2 + $0x84] sm:$0xf]
    %v135 = vld [vmem:[#allocation2 + $0x88] sm:$0x1]
    %v136 = vunpack.c.l.bf16 %v135
    %v137 = vperm.slane %v136, 0
    %v154 = vunpack.c.l.b16 %v119
    %v155 = vunpack.c.l.b16 %v120
    %v156 = vunpack.c.l.b16 %v121
    %v157 = vunpack.c.l.b16 %v122
    %v158 = vunpack.c.l.b16 %v123
    %v159 = vunpack.c.l.b16 %v124
    %v160 = vunpack.c.l.b16 %v125
    %v161 = vunpack.c.l.b16 %v126
    %v162 = vunpack.c.l.b16 %v127
    %v163 = vunpack.c.l.b16 %v128
    %v164 = vunpack.c.l.b16 %v129
    %v165 = vunpack.c.l.b16 %v130
    %v166 = vunpack.c.l.b16 %v131
    %v167 = vunpack.c.l.b16 %v132
    %v168 = vunpack.c.l.b16 %v133
    %v169 = vunpack.c.l.b16 %v134
    %v170 = vpack.c.b16 %v155, %v154
    %v171 = vpack.c.b16 %v157, %v156
    %v172 = vpack.c.b16 %v159, %v158
    %v173 = vpack.c.b16 %v161, %v160
    %v174 = vpack.c.b16 %v163, %v162
    %v175 = vpack.c.b16 %v165, %v164
    %v176 = vpack.c.b16 %v167, %v166
    %v177 = vpack.c.b16 %v169, %v168
    %186 = vmatpush.bf16.msra.mxu0 %v177
    %187 = vmatpush.bf16.msra.mxu0 %v176
    %188 = vmatpush.bf16.msra.mxu0 %v175
    %189 = vmatpush.bf16.msra.mxu0 %v174
    %190 = vmatpush.bf16.msra.mxu0 %v173
    %191 = vmatpush.bf16.msra.mxu0 %v172
    %192 = vmatpush.bf16.msra.mxu0 %v171
    %193 = vmatpush.bf16.msra.mxu0 %v170
    %194 = vmatmul.bf16.gmra.mxu0 %v118
    %v195 = vpop.f32.mrf.mxu0
    %v196 = vadd.f32 %v137, %v195
    %v197 = vpop.f32.mrf.mxu0
    %v198 = vadd.f32 %v137, %v197
    %199 = vdwg.mxu0
    %v200 = vmax.f32 %v196, 0.0
    %v201 = vmax.f32 %v198, 0.0
    %v202 = vpack.c.bf16 %v201, %v200
    %v203 = vld [vmem:[#allocation2 + $0x90] sm:$0xf]
    %v204 = vld [vmem:[#allocation2 + $0x94] sm:$0xf]
    %v205 = vld [vmem:[#allocation2 + $0x98] sm:$0xf]
    %v206 = vld [vmem:[#allocation2 + $0x9c] sm:$0xf]
    %v207 = vld [vmem:[#allocation2 + $0xa0] sm:$0xf]
    %v208 = vld [vmem:[#allocation2 + $0xa4] sm:$0xf]
    %v209 = vld [vmem:[#allocation2 + $0xa8] sm:$0xf]
    %v210 = vld [vmem:[#allocation2 + $0xac] sm:$0xf]
    %v211 = vld [vmem:[#allocation2 + $0xb0] sm:$0xf]
    %v212 = vld [vmem:[#allocation2 + $0xb4] sm:$0xf]
    %v213 = vld [vmem:[#allocation2 + $0xb8] sm:$0xf]
    %v214 = vld [vmem:[#allocation2 + $0xbc] sm:$0xf]
    %v215 = vld [vmem:[#allocation2 + $0xc0] sm:$0xf]
    %v216 = vld [vmem:[#allocation2 + $0xc4] sm:$0xf]
    %v217 = vld [vmem:[#allocation2 + $0xc8] sm:$0xf]
    %v218 = vld [vmem:[#allocation2 + $0xcc] sm:$0xf]
    %v219 = vld [vmem:[#allocation2 + $0xd0] sm:$0x1]
    %v220 = vunpack.c.l.bf16 %v219
    %v221 = vperm.slane %v220, 0
    %v238 = vunpack.c.l.b16 %v203
    %v239 = vunpack.c.l.b16 %v204
    %v240 = vunpack.c.l.b16 %v205
    %v241 = vunpack.c.l.b16 %v206
    %v242 = vunpack.c.l.b16 %v207
    %v243 = vunpack.c.l.b16 %v208
    %v244 = vunpack.c.l.b16 %v209
    %v245 = vunpack.c.l.b16 %v210
    %v246 = vunpack.c.l.b16 %v211
    %v247 = vunpack.c.l.b16 %v212
    %v248 = vunpack.c.l.b16 %v213
    %v249 = vunpack.c.l.b16 %v214
    %v250 = vunpack.c.l.b16 %v215
    %v251 = vunpack.c.l.b16 %v216
    %v252 = vunpack.c.l.b16 %v217
    %v253 = vunpack.c.l.b16 %v218
    %v254 = vpack.c.b16 %v239, %v238
    %v255 = vpack.c.b16 %v241, %v240
    %v256 = vpack.c.b16 %v243, %v242
    %v257 = vpack.c.b16 %v245, %v244
    %v258 = vpack.c.b16 %v247, %v246
    %v259 = vpack.c.b16 %v249, %v248
    %v260 = vpack.c.b16 %v251, %v250
    %v261 = vpack.c.b16 %v253, %v252
    %270 = vmatpush.bf16.msra.mxu0 %v261
    %271 = vmatpush.bf16.msra.mxu0 %v260
    %272 = vmatpush.bf16.msra.mxu0 %v259
    %273 = vmatpush.bf16.msra.mxu0 %v258
    %274 = vmatpush.bf16.msra.mxu0 %v257
    %275 = vmatpush.bf16.msra.mxu0 %v256
    %276 = vmatpush.bf16.msra.mxu0 %v255
    %277 = vmatpush.bf16.msra.mxu0 %v254
    %278 = vmatmul.bf16.gmra.mxu0 %v202
    %v279 = vpop.f32.mrf.mxu0
    %v280 = vadd.f32 %v221, %v279
    %v281 = vpop.f32.mrf.mxu0
    %v282 = vadd.f32 %v221, %v281
    %283 = vdwg.mxu0
    %284 = vst [vmem:[%s2] sm:$0xff] %v280
    %285 = vst [vmem:[%s2 + $0x8] sm:$0xff] %v282
    // Predicated region
    $region14: #{mlp_forward.1} parent=1 // pred_check
      _
    $region15: #{mlp_forward.1} parent=1 // pred_check_branch
      %287 = sbr.rel (0) target = $region17
    $region16: #{mlp_forward.1} parent=1 // pred_region
      _
    $region17: #{mlp_forward.1} parent=1 // pred_fallthru
      _
    // Predicated region
    $region18: #{mlp_forward.1} parent=1 // pred_check
      _
    $region19: #{mlp_forward.1} parent=1 // pred_check_branch
      %289 = sbr.rel (0) target = $region21
    $region20: #{mlp_forward.1} parent=1 // pred_region
      _
    $region21: #{mlp_forward.1} parent=1 // pred_fallthru
      _
    %290 = vsyncpa [#allocation3], 1

</llo_original>
